<compile_context>
chip_gen: v7x
topology: tpu7x:2x2x1
jax: 0.10.0
libtpu: 0.0.40
codegen_flags: <defaults>
</compile_context>

<pallas_src>
import jax
import jax.numpy as jnp
import numpy as np
from jax import lax
from jax.experimental import pallas as pl
from jax.experimental.pallas import tpu as pltpu

# ---- problem sizes (small, consistent with the module's forward) -----------
B, C_IN, H, W = 2, 4, 16, 16
IN_FEATURES = 32            # backbone feature dim == in_features of the heads
NUM_HEADS = 14
HEAD_OUT = 2
TOTAL_OUT = NUM_HEADS * HEAD_OUT   # 28 (all heads fused into one matmul)
KH = KW = 3
K_IM2COL = KH * KW * C_IN          # 36
ROWS = B * H * W                   # 512
OUT_ROWS = 8                       # sublane granule  -> unmasked output store
OUT_LANES = 128                    # lane granule     -> unmasked output store

HEAD_NAMES = (
    "atelectasis", "cardiomegaly", "effusion", "infiltration", "mass",
    "nodule", "pneumonia", "pneumothorax", "consolidation", "edema",
    "emphysema", "fibrosis", "pleural", "hernia",
)


# ---- Pallas kernel ----------------------------------------------------------
def _multilabel_kernel(x_ref, cw_ref, cb_ref, hw_ref, hb_ref, out_ref):
    # x_ref  : (ROWS, 36)        im2col activations (B*H*W rows, 9*C_IN cols)
    # cw_ref : (36, F)           conv weights flattened (dy, dx, c) row order
    # cb_ref : (1, F)            conv bias
    # hw_ref : (F, 128)          14 heads fused + zero-padded to 128 lanes
    # hb_ref : (1, 128)          fused head biases, zero-padded
    # out_ref: (8, 128)          lane-dense logits slab; rows [0:B], cols [0:28] valid
    f32 = jnp.float32

    # --- 3x3 conv (SAME, stride 1) as ONE K=36 matmul on the MXU ------------
    feat = jnp.dot(x_ref[...], cw_ref[...], preferred_element_type=f32)
    feat = jnp.maximum(feat + cb_ref[...], 0.0)                 # (ROWS, F), bias + ReLU

    # --- global average pool as a constant (8, ROWS) matmul -----------------
    # The cross-sublane reduction rides the otherwise-idle MXU (no XLU reduce,
    # no (512, 32) reshape kept live in vregs); 1/(H*W) is folded into the
    # pool matrix.  Rows r >= B of the pool matrix are all-zero.
    r = lax.broadcasted_iota(jnp.int32, (OUT_ROWS, ROWS), 0)
    c = lax.broadcasted_iota(jnp.int32, (OUT_ROWS, ROWS), 1)
    hw_pix = H * W
    pool = jnp.where((c >= r * hw_pix) & (c < (r + 1) * hw_pix),
                     1.0 / hw_pix, 0.0).astype(f32)             # (8, ROWS)
    pooled = jnp.dot(pool, feat, preferred_element_type=f32)    # (8, F)

    # --- 14 Linear(in_features, 2) heads fused into one (F, 128) matmul -----
    # Dropout(p=0.2) before each head is identity at inference time.
    logits = jnp.dot(pooled, hw_ref[...], preferred_element_type=f32) + hb_ref[...]
    out_ref[...] = logits.astype(out_ref.dtype)                 # full unmasked store


# ---- wrapper ----------------------------------------------------------------
@jax.jit
def multilabel_forward(x_nchw, conv_w, conv_b, head_w, head_b):
    """x_nchw: (B, C_IN, H, W) float32.  Returns dict of 14 x (B, 2) logits."""
    # Wrapper-side im2col: lane-dense (B*H*W, 9*C_IN) slab.  Under jit, and with
    # allow_input_fusion on input 0, this producer chain fuses into the
    # pallas_call input instead of round-tripping through HBM.
    x = jnp.transpose(x_nchw, (0, 2, 3, 1))                     # NCHW -> NHWC
    xp = jnp.pad(x, ((0, 0), (1, 1), (1, 1), (0, 0)))           # SAME padding
    taps = [xp[:, dy:dy + H, dx:dx + W, :]                      # (B, H, W, C_IN)
            for dy in range(KH) for dx in range(KW)]
    im2col = jnp.stack(taps, axis=3).reshape(ROWS, K_IM2COL)    # (512, 36)

    # Flatten conv weights to match the (dy, dx, c) row order of im2col.
    cw2d = conv_w.reshape(K_IM2COL, IN_FEATURES)                # (36, 32)
    cb2d = conv_b.reshape(1, IN_FEATURES)                       # (1, 32)

    # Pad the fused heads to 128 lanes so the kernel output store is unmasked.
    hw_pad = jnp.zeros((IN_FEATURES, OUT_LANES), jnp.float32).at[:, :TOTAL_OUT].set(head_w)
    hb_pad = jnp.zeros((1, OUT_LANES), jnp.float32).at[:, :TOTAL_OUT].set(head_b)

    vmem = pl.BlockSpec(memory_space=pltpu.MemorySpace.VMEM)
    fused_pad = pl.pallas_call(
        _multilabel_kernel,
        out_shape=jax.ShapeDtypeStruct((OUT_ROWS, OUT_LANES), jnp.float32),
        in_specs=[vmem, vmem, vmem, vmem, vmem],                # gridless: no pipeline
        out_specs=vmem,
        compiler_params=pltpu.CompilerParams(
            allow_input_fusion=[True, False, False, False, False]),
        cost_estimate=pl.CostEstimate(
            flops=1_500_000, bytes_accessed=100_000, transcendentals=0),
    )(im2col, cw2d, cb2d, hw_pad, hb_pad)

    # One reshape instead of 14 strided slices of the fused logits.
    fused = fused_pad[:B, :TOTAL_OUT].reshape(B, NUM_HEADS, HEAD_OUT)
    return {name: fused[:, i, :] for i, name in enumerate(HEAD_NAMES)}


# ---- pure-JAX reference (for correctness check) -----------------------------
def reference_forward(x_nchw, conv_w, conv_b, head_w, head_b):
    x = jnp.transpose(x_nchw, (0, 2, 3, 1))
    y = lax.conv_general_dilated(
        x, conv_w, window_strides=(1, 1), padding="SAME",
        dimension_numbers=("NHWC", "HWIO", "NHWC"))
    y = jnp.maximum(y + conv_b, 0.0)
    pooled = jnp.mean(y, axis=(1, 2))                           # (B, F)
    fused = pooled @ head_w + head_b                            # (B, 28)
    return {name: fused[:, 2 * i:2 * i + 2] for i, name in enumerate(HEAD_NAMES)}


if __name__ == "__main__":
    key = jax.random.PRNGKey(0)
    kx, kcw, kcb, khw, khb = jax.random.split(key, 5)

    # Deterministic synthetic parameters.
    # TODO(synk): the timm backbone is opaque; a synthetic conv+pool stand-in
    # with matching output dimensionality is used instead.
    x = jax.random.normal(kx, (B, C_IN, H, W), jnp.float32)
    conv_w = 0.1 * jax.random.normal(kcw, (KH, KW, C_IN, IN_FEATURES), jnp.float32)
    conv_b = 0.1 * jax.random.normal(kcb, (IN_FEATURES,), jnp.float32)
    head_w = 0.1 * jax.random.normal(khw, (IN_FEATURES, TOTAL_OUT), jnp.float32)
    head_b = 0.1 * jax.random.normal(khb, (TOTAL_OUT,), jnp.float32)

    out = multilabel_forward(x, conv_w, conv_b, head_w, head_b)
    out = jax.tree_util.tree_map(jax.block_until_ready, out)

    ref = reference_forward(x, conv_w, conv_b, head_w, head_b)
    for name in HEAD_NAMES:
        assert out[name].shape == (B, HEAD_OUT)
        np.testing.assert_allclose(np.asarray(out[name]),
                                   np.asarray(ref[name]),
                                   rtol=1e-4, atol=1e-4)

    print("KERNEL_OK")
</pallas_src>

<mosaic_0001>
module attributes {stable_mosaic.version = 11 : i64} {
  func.func @_multilabel_kernel(%arg0: memref<512x36xf32, #tpu.memory_space<vmem>>, %arg1: memref<36x32xf32, #tpu.memory_space<vmem>>, %arg2: memref<1x32xf32, #tpu.memory_space<vmem>>, %arg3: memref<32x128xf32, #tpu.memory_space<vmem>>, %arg4: memref<1x128xf32, #tpu.memory_space<vmem>>, %arg5: memref<8x128xf32, #tpu.memory_space<vmem>>) attributes {dimension_semantics = [], scalar_prefetch = 0 : i64, scratch_operands = 0 : i64, tpu.core_type = #tpu.core_type<tc>} {
    %c0 = arith.constant 0 : index
    %c0_0 = arith.constant 0 : index
    %0 = vector.load %arg0[%c0, %c0_0] : memref<512x36xf32, #tpu.memory_space<vmem>>, vector<512x36xf32>
    %c0_1 = arith.constant 0 : index
    %c0_2 = arith.constant 0 : index
    %1 = vector.load %arg1[%c0_1, %c0_2] : memref<36x32xf32, #tpu.memory_space<vmem>>, vector<36x32xf32>
    %cst = arith.constant dense<0.000000e+00> : vector<512x32xf32>
    %2 = tpu.matmul %0, %1, %cst {dimension_numbers = #tpu.dot_dimension_numbers<[1], [0], [0], [1], [0, 0, 1, 1], [], []>} : vector<512x36xf32>, vector<36x32xf32>, vector<512x32xf32> -> vector<512x32xf32>
    %c0_3 = arith.constant 0 : index
    %c0_4 = arith.constant 0 : index
    %3 = vector.load %arg2[%c0_3, %c0_4] : memref<1x32xf32, #tpu.memory_space<vmem>>, vector<1x32xf32>
    %4 = vector.broadcast %3 : vector<1x32xf32> to vector<512x32xf32>
    %5 = arith.addf %2, %4 : vector<512x32xf32>
    %cst_5 = arith.constant 0.000000e+00 : f32
    %6 = vector.broadcast %cst_5 : f32 to vector<512x32xf32>
    %7 = arith.maximumf %5, %6 : vector<512x32xf32>
    %8 = tpu.iota {dimensions = array<i32: 0>} : vector<8x512xi32>
    %9 = tpu.iota {dimensions = array<i32: 1>} : vector<8x512xi32>
    %c256_i32 = arith.constant 256 : i32
    %10 = vector.broadcast %c256_i32 : i32 to vector<8x512xi32>
    %11 = arith.muli %8, %10 : vector<8x512xi32>
    %12 = arith.cmpi sge, %9, %11 : vector<8x512xi32>
    %c1_i32 = arith.constant 1 : i32
    %13 = vector.broadcast %c1_i32 : i32 to vector<8x512xi32>
    %14 = arith.addi %8, %13 : vector<8x512xi32>
    %c256_i32_6 = arith.constant 256 : i32
    %15 = vector.broadcast %c256_i32_6 : i32 to vector<8x512xi32>
    %16 = arith.muli %14, %15 : vector<8x512xi32>
    %17 = arith.cmpi slt, %9, %16 : vector<8x512xi32>
    %18 = arith.andi %12, %17 : vector<8x512xi1>
    %cst_7 = arith.constant 3.906250e-03 : f32
    %cst_8 = arith.constant 0.000000e+00 : f32
    %19 = vector.broadcast %cst_7 : f32 to vector<8x512xf32>
    %20 = vector.broadcast %cst_8 : f32 to vector<8x512xf32>
    %21 = arith.select %18, %19, %20 : vector<8x512xi1>, vector<8x512xf32>
    %cst_9 = arith.constant dense<0.000000e+00> : vector<8x32xf32>
    %22 = tpu.matmul %21, %7, %cst_9 {dimension_numbers = #tpu.dot_dimension_numbers<[1], [0], [0], [1], [0, 0, 1, 1], [], []>} : vector<8x512xf32>, vector<512x32xf32>, vector<8x32xf32> -> vector<8x32xf32>
    %c0_10 = arith.constant 0 : index
    %c0_11 = arith.constant 0 : index
    %23 = vector.load %arg3[%c0_10, %c0_11] : memref<32x128xf32, #tpu.memory_space<vmem>>, vector<32x128xf32>
    %cst_12 = arith.constant dense<0.000000e+00> : vector<8x128xf32>
    %24 = tpu.matmul %22, %23, %cst_12 {dimension_numbers = #tpu.dot_dimension_numbers<[1], [0], [0], [1], [0, 0, 1, 1], [], []>} : vector<8x32xf32>, vector<32x128xf32>, vector<8x128xf32> -> vector<8x128xf32>
    %c0_13 = arith.constant 0 : index
    %c0_14 = arith.constant 0 : index
    %25 = vector.load %arg4[%c0_13, %c0_14] : memref<1x128xf32, #tpu.memory_space<vmem>>, vector<1x128xf32>
    %26 = vector.broadcast %25 : vector<1x128xf32> to vector<8x128xf32>
    %27 = arith.addf %24, %26 : vector<8x128xf32>
    %c0_15 = arith.constant 0 : index
    %c0_16 = arith.constant 0 : index
    %28 = vector.load %arg5[%c0_15, %c0_16] : memref<8x128xf32, #tpu.memory_space<vmem>>, vector<8x128xf32>
    tpu.vector_store %arg5[%c0_15, %c0_16], %27 {strides = array<i32>} : memref<8x128xf32, #tpu.memory_space<vmem>>, vector<8x128xf32>,
    return
  }
}

</mosaic_0001>

<llo_original>
// kernel: multilabel_forward.1
$region0: #{multilabel_forward.1}
  #allocation0 [shape = 'u32[]', space=smem, size = 0x4, offset = 0x4, fixed_abs, tag = 'smem constant byte address 0x4 - core index']
  #allocation1 [shape = 'u32[144,128]{1,0:T(1,128)}', space=vmem, size = 0x12000, scoped, tag = 'internal scratch']
  %s0 = inlined_call_operand.vmem [shape: f32[512,36], index: 0, kind: input, shape index: {}]
  %s1 = inlined_call_operand.vmem [shape: f32[36,32], index: 1, kind: input, shape index: {}]
  %s2 = inlined_call_operand.vmem [shape: f32[1,32], index: 2, kind: input, shape index: {}]
  %s3 = inlined_call_operand.vmem [shape: f32[32,128], index: 3, kind: input, shape index: {}]
  %s4 = inlined_call_operand.vmem [shape: f32[1,128], index: 4, kind: input, shape index: {}]
  %s5 = inlined_call_operand.vmem [shape: f32[8,128], index: 5, kind: output, shape index: {}]
  %s6 = sld [smem:[#allocation0]]
  $region30: #{multilabel_forward.1} parent=0
    _
  %s8 = ssub.s32 1, %s6
  %s9 = scalar_select 0, %s8, %s6
  // Predicated region
  $region2: #{multilabel_forward.1} parent=0 // pred_check
    _
  $region3: #{multilabel_forward.1} parent=0 // pred_check_branch
    %11 = sbr.rel (0) target = $region5
  $region4: #{multilabel_forward.1} parent=0 // pred_region
    _
  $region5: #{multilabel_forward.1} parent=0 // pred_fallthru
    _
  // Predicated region
  $region6: #{multilabel_forward.1} parent=0 // pred_check
    _
  $region7: #{multilabel_forward.1} parent=0 // pred_check_branch
    %13 = sbr.rel (0) target = $region9
  $region8: #{multilabel_forward.1} parent=0 // pred_region
    _
  $region9: #{multilabel_forward.1} parent=0 // pred_fallthru
    _
  // Predicated region
  $region10: #{multilabel_forward.1} parent=0 // pred_check
    _
  $region11: #{multilabel_forward.1} parent=0 // pred_check_branch
    %15 = sbr.rel (0) target = $region13
  $region12: #{multilabel_forward.1} parent=0 // pred_region
    _
  $region13: #{multilabel_forward.1} parent=0 // pred_fallthru
    _
  // Predicated region
  $region14: #{multilabel_forward.1} parent=0 // pred_check
    _
  $region15: #{multilabel_forward.1} parent=0 // pred_check_branch
    %17 = sbr.rel (0) target = $region17
  $region16: #{multilabel_forward.1} parent=0 // pred_region
    _
  $region17: #{multilabel_forward.1} parent=0 // pred_fallthru
    _
  // Predicated region
  $region18: #{multilabel_forward.1} parent=0 // pred_check
    _
  $region19: #{multilabel_forward.1} parent=0 // pred_check_branch
    %19 = sbr.rel (0) target = $region21
  $region20: #{multilabel_forward.1} parent=0 // pred_region
    _
  $region21: #{multilabel_forward.1} parent=0 // pred_fallthru
    _
  %v20 = vld [vmem:[%s0] sm:$0xff]
  %v21 = vld [vmem:[%s0 + $0x8] sm:$0xff]
  %v22 = vld [vmem:[%s0 + $0x10] sm:$0xff]
  %v23 = vld [vmem:[%s0 + $0x18] sm:$0xff]
  %v24 = vld [vmem:[%s0 + $0x20] sm:$0xff]
  %v25 = vld [vmem:[%s0 + $0x28] sm:$0xff]
  %v26 = vld [vmem:[%s0 + $0x30] sm:$0xff]
  %v27 = vld [vmem:[%s0 + $0x38] sm:$0xff]
  %v28 = vld [vmem:[%s0 + $0x40] sm:$0xff]
  %v29 = vld [vmem:[%s0 + $0x48] sm:$0xff]
  %v30 = vld [vmem:[%s0 + $0x50] sm:$0xff]
  %v31 = vld [vmem:[%s0 + $0x58] sm:$0xff]
  %v32 = vld [vmem:[%s0 + $0x60] sm:$0xff]
  %v33 = vld [vmem:[%s0 + $0x68] sm:$0xff]
  %v34 = vld [vmem:[%s0 + $0x70] sm:$0xff]
  %v35 = vld [vmem:[%s0 + $0x78] sm:$0xff]
  %v36 = vld [vmem:[%s0 + $0x80] sm:$0xff]
  %v37 = vld [vmem:[%s0 + $0x88] sm:$0xff]
  %v38 = vld [vmem:[%s0 + $0x90] sm:$0xff]
  %v39 = vld [vmem:[%s0 + $0x98] sm:$0xff]
  %v40 = vld [vmem:[%s0 + $0xa0] sm:$0xff]
  %v41 = vld [vmem:[%s0 + $0xa8] sm:$0xff]
  %v42 = vld [vmem:[%s0 + $0xb0] sm:$0xff]
  %v43 = vld [vmem:[%s0 + $0xb8] sm:$0xff]
  %v44 = vld [vmem:[%s0 + $0xc0] sm:$0xff]
  %v45 = vld [vmem:[%s0 + $0xc8] sm:$0xff]
  %v46 = vld [vmem:[%s0 + $0xd0] sm:$0xff]
  %v47 = vld [vmem:[%s0 + $0xd8] sm:$0xff]
  %v48 = vld [vmem:[%s0 + $0xe0] sm:$0xff]
  %v49 = vld [vmem:[%s0 + $0xe8] sm:$0xff]
  %v50 = vld [vmem:[%s0 + $0xf0] sm:$0xff]
  %v51 = vld [vmem:[%s0 + $0xf8] sm:$0xff]
  %v52 = vld [vmem:[%s0 + $0x100] sm:$0xff]
  %v53 = vld [vmem:[%s0 + $0x108] sm:$0xff]
  %v54 = vld [vmem:[%s0 + $0x110] sm:$0xff]
  %v55 = vld [vmem:[%s0 + $0x118] sm:$0xff]
  %v56 = vld [vmem:[%s0 + $0x120] sm:$0xff]
  %v57 = vld [vmem:[%s0 + $0x128] sm:$0xff]
  %v58 = vld [vmem:[%s0 + $0x130] sm:$0xff]
  %v59 = vld [vmem:[%s0 + $0x138] sm:$0xff]
  %v60 = vld [vmem:[%s0 + $0x140] sm:$0xff]
  %v61 = vld [vmem:[%s0 + $0x148] sm:$0xff]
  %v62 = vld [vmem:[%s0 + $0x150] sm:$0xff]
  %v63 = vld [vmem:[%s0 + $0x158] sm:$0xff]
  %v64 = vld [vmem:[%s0 + $0x160] sm:$0xff]
  %v65 = vld [vmem:[%s0 + $0x168] sm:$0xff]
  %v66 = vld [vmem:[%s0 + $0x170] sm:$0xff]
  %v67 = vld [vmem:[%s0 + $0x178] sm:$0xff]
  %v68 = vld [vmem:[%s0 + $0x180] sm:$0xff]
  %v69 = vld [vmem:[%s0 + $0x188] sm:$0xff]
  %v70 = vld [vmem:[%s0 + $0x190] sm:$0xff]
  %v71 = vld [vmem:[%s0 + $0x198] sm:$0xff]
  %v72 = vld [vmem:[%s0 + $0x1a0] sm:$0xff]
  %v73 = vld [vmem:[%s0 + $0x1a8] sm:$0xff]
  %v74 = vld [vmem:[%s0 + $0x1b0] sm:$0xff]
  %v75 = vld [vmem:[%s0 + $0x1b8] sm:$0xff]
  %v76 = vld [vmem:[%s0 + $0x1c0] sm:$0xff]
  %v77 = vld [vmem:[%s0 + $0x1c8] sm:$0xff]
  %v78 = vld [vmem:[%s0 + $0x1d0] sm:$0xff]
  %v79 = vld [vmem:[%s0 + $0x1d8] sm:$0xff]
  %v80 = vld [vmem:[%s0 + $0x1e0] sm:$0xff]
  %v81 = vld [vmem:[%s0 + $0x1e8] sm:$0xff]
  %v82 = vld [vmem:[%s0 + $0x1f0] sm:$0xff]
  %v83 = vld [vmem:[%s0 + $0x1f8] sm:$0xff]
  %v84 = vld [vmem:[%s1] sm:$0xff]
  %v85 = vld [vmem:[%s1 + $0x8] sm:$0xff]
  %v86 = vld [vmem:[%s1 + $0x10] sm:$0xff]
  %v87 = vld [vmem:[%s1 + $0x18] sm:$0xff]
  %v88 = vld [vmem:[%s1 + $0x20] sm:$0xf]
  %v89 = vld [vmem:[%s2] sm:$0x1]
  %v91 = vlaneseq
  %v92 = vshrl.u32 %v91, 7
  %v93 = vsub.s32 0, %v92
  %v94 = vrot.slane %v89, %v93
  %vm96 = vcmask 293888
  %v98 = vsel %vm96, %v20, 0
  %v101 = vsel %vm96, %v21, 0
  %v104 = vsel %vm96, %v22, 0
  %v107 = vsel %vm96, %v23, 0
  %v110 = vsel %vm96, %v24, 0
  %v113 = vsel %vm96, %v25, 0
  %v116 = vsel %vm96, %v26, 0
  %v119 = vsel %vm96, %v27, 0
  %v122 = vsel %vm96, %v28, 0
  %v125 = vsel %vm96, %v29, 0
  %v128 = vsel %vm96, %v30, 0
  %v131 = vsel %vm96, %v31, 0
  %v134 = vsel %vm96, %v32, 0
  %v137 = vsel %vm96, %v33, 0
  %v140 = vsel %vm96, %v34, 0
  %v143 = vsel %vm96, %v35, 0
  %v146 = vsel %vm96, %v36, 0
  %v149 = vsel %vm96, %v37, 0
  %v152 = vsel %vm96, %v38, 0
  %v155 = vsel %vm96, %v39, 0
  %v158 = vsel %vm96, %v40, 0
  %v161 = vsel %vm96, %v41, 0
  %v164 = vsel %vm96, %v42, 0
  %v167 = vsel %vm96, %v43, 0
  %v170 = vsel %vm96, %v44, 0
  %v173 = vsel %vm96, %v45, 0
  %v176 = vsel %vm96, %v46, 0
  %v179 = vsel %vm96, %v47, 0
  %v182 = vsel %vm96, %v48, 0
  %v185 = vsel %vm96, %v49, 0
  %v188 = vsel %vm96, %v50, 0
  %v191 = vsel %vm96, %v51, 0
  %v194 = vsel %vm96, %v52, 0
  %v197 = vsel %vm96, %v53, 0
  %v200 = vsel %vm96, %v54, 0
  %v203 = vsel %vm96, %v55, 0
  %v206 = vsel %vm96, %v56, 0
  %v209 = vsel %vm96, %v57, 0
  %v212 = vsel %vm96, %v58, 0
  %v215 = vsel %vm96, %v59, 0
  %v218 = vsel %vm96, %v60, 0
  %v221 = vsel %vm96, %v61, 0
  %v224 = vsel %vm96, %v62, 0
  %v227 = vsel %vm96, %v63, 0
  %v230 = vsel %vm96, %v64, 0
  %v233 = vsel %vm96, %v65, 0
  %v236 = vsel %vm96, %v66, 0
  %v239 = vsel %vm96, %v67, 0
  %v242 = vsel %vm96, %v68, 0
  %v245 = vsel %vm96, %v69, 0
  %v248 = vsel %vm96, %v70, 0
  %v251 = vsel %vm96, %v71, 0
  %v254 = vsel %vm96, %v72, 0
  %v257 = vsel %vm96, %v73, 0
  %v260 = vsel %vm96, %v74, 0
  %v263 = vsel %vm96, %v75, 0
  %v266 = vsel %vm96, %v76, 0
  %v269 = vsel %vm96, %v77, 0
  %v272 = vsel %vm96, %v78, 0
  %v275 = vsel %vm96, %v79, 0
  %v278 = vsel %vm96, %v80, 0
  %v281 = vsel %vm96, %v81, 0
  %v284 = vsel %vm96, %v82, 0
  %v287 = vsel %vm96, %v83, 0
  %vm289 = vcmask 1043456
  %v291 = vsel %vm289, %v88, 0
  %293 = vmatprep.subr.mxu0 0.0
  %294 = vmatpush1.msra.mxu0 %v84
  %295 = vmatprep.subr.mxu0 0.0
  %296 = vmatpush1.msra.mxu0 %v85
  %297 = vmatprep.subr.mxu0 0.0
  %298 = vmatpush1.msra.mxu0 %v86
  %299 = vmatprep.subr.mxu0 0.0
  %300 = vmatpush1.msra.mxu0 %v87
  %301 = vmatprep.subr.mxu0 0.0
  %302 = vmatpush1.msra.mxu0 %v291
  %303 = vmatprep.subr.mxu0 0.0
  %304 = vmatpush1.msra.mxu0 0.0
  %305 = vmatprep.subr.mxu0 0.0
  %306 = vmatpush1.msra.mxu0 0.0
  %307 = vmatprep.subr.mxu0 0.0
  %308 = vmatpush1.msra.mxu0 0.0
  %309 = vmatprep.subr.mxu0 0.0
  %310 = vmatpush1.msra.mxu0 0.0
  %311 = vmatprep.subr.mxu0 0.0
  %312 = vmatpush1.msra.mxu0 0.0
  %313 = vmatprep.subr.mxu0 0.0
  %314 = vmatpush1.msra.mxu0 0.0
  %315 = vmatprep.subr.mxu0 0.0
  %316 = vmatpush1.msra.mxu0 0.0
  %317 = vmatprep.subr.mxu0 0.0
  %318 = vmatpush1.msra.mxu0 0.0
  %319 = vmatprep.subr.mxu0 0.0
  %320 = vmatpush1.msra.mxu0 0.0
  %321 = vmatprep.subr.mxu0 0.0
  %322 = vmatpush1.msra.mxu0 0.0
  %323 = vmatprep.subr.mxu0 0.0
  %324 = vmatpush1.msra.mxu0 0.0
  %325 = vmatprep.subr.mxu0 0.0
  %326 = vmatpush1.msra.mxu0 0.0
  %327 = vmatprep.subr.mxu0 0.0
  %328 = vmatpush1.msra.mxu0 0.0
  %329 = vmatprep.subr.mxu0 0.0
  %330 = vmatpush1.msra.mxu0 0.0
  %331 = vmatprep.subr.mxu0 0.0
  %332 = vmatpush1.msra.mxu0 0.0
  %333 = vmatprep.subr.mxu0 0.0
  %334 = vmatpush1.msra.mxu0 0.0
  %335 = vmatprep.subr.mxu0 0.0
  %336 = vmatpush1.msra.mxu0 0.0
  %337 = vmatprep.subr.mxu0 0.0
  %338 = vmatpush1.msra.mxu0 0.0
  %339 = vmatprep.subr.mxu0 0.0
  %340 = vmatpush1.msra.mxu0 0.0
  %341 = vmatprep.subr.mxu0 0.0
  %342 = vmatpush1.msra.mxu0 0.0
  %343 = vmatprep.subr.mxu0 0.0
  %344 = vmatpush1.msra.mxu0 0.0
  %345 = vmatprep.subr.mxu0 0.0
  %346 = vmatpush1.msra.mxu0 0.0
  %347 = vmatprep.subr.mxu0 0.0
  %348 = vmatpush1.msra.mxu0 0.0
  %349 = vmatprep.subr.mxu0 0.0
  %350 = vmatpush1.msra.mxu0 0.0
  %351 = vmatprep.subr.mxu0 0.0
  %352 = vmatpush1.msra.mxu0 0.0
  %353 = vmatprep.subr.mxu0 0.0
  %354 = vmatpush1.msra.mxu0 0.0
  %355 = vmatprep.subr.mxu0 0.0
  %356 = vmatpush1.msra.mxu0 0.0
  %357 = vmatprep.mubr.f32.mxu0 0.0
  %358 = vmatmul.mubr.f32.gmra.mrb[0].mxu0 %v98
  %v359 = vpop.f32.mrb[0].mxu0
  %v360 = vadd.f32 %v94, %v359
  %v361 = vpop.f32.mrb[0].mxu0
  %362 = vmatprep.mubr.f32.mxu0 0.0
  %363 = vmatmul.mubr.f32.gmra.mrb[0].mxu0 %v101
  %v364 = vpop.f32.mrb[0].mxu0
  %v365 = vadd.f32 %v94, %v364
  %v366 = vpop.f32.mrb[0].mxu0
  %367 = vmatprep.mubr.f32.mxu0 0.0
  %368 = vmatmul.mubr.f32.gmra.mrb[0].mxu0 %v104
  %v369 = vpop.f32.mrb[0].mxu0
  %v370 = vadd.f32 %v94, %v369
  %v371 = vpop.f32.mrb[0].mxu0
  %372 = vmatprep.mubr.f32.mxu0 0.0
  %373 = vmatmul.mubr.f32.gmra.mrb[0].mxu0 %v107
  %v374 = vpop.f32.mrb[0].mxu0
  %v375 = vadd.f32 %v94, %v374
  %v376 = vpop.f32.mrb[0].mxu0
  %377 = vmatprep.mubr.f32.mxu0 0.0
  %378 = vmatmul.mubr.f32.gmra.mrb[0].mxu0 %v110
  %v379 = vpop.f32.mrb[0].mxu0
  %v380 = vadd.f32 %v94, %v379
  %v381 = vpop.f32.mrb[0].mxu0
  %382 = vmatprep.mubr.f32.mxu0 0.0
  %383 = vmatmul.mubr.f32.gmra.mrb[0].mxu0 %v113
  %v384 = vpop.f32.mrb[0].mxu0
  %v385 = vadd.f32 %v94, %v384
  %v386 = vpop.f32.mrb[0].mxu0
  %387 = vmatprep.mubr.f32.mxu0 0.0
  %388 = vmatmul.mubr.f32.gmra.mrb[0].mxu0 %v116
  %v389 = vpop.f32.mrb[0].mxu0
  %v390 = vadd.f32 %v94, %v389
  %v391 = vpop.f32.mrb[0].mxu0
  %392 = vmatprep.mubr.f32.mxu0 0.0
  %393 = vmatmul.mubr.f32.gmra.mrb[0].mxu0 %v119
  %v394 = vpop.f32.mrb[0].mxu0
  %v395 = vadd.f32 %v94, %v394
  %v396 = vpop.f32.mrb[0].mxu0
  %397 = vmatprep.mubr.f32.mxu0 0.0
  %398 = vmatmul.mubr.f32.gmra.mrb[0].mxu0 %v122
  %v399 = vpop.f32.mrb[0].mxu0
  %v400 = vadd.f32 %v94, %v399
  %v401 = vpop.f32.mrb[0].mxu0
  %402 = vmatprep.mubr.f32.mxu0 0.0
  %403 = vmatmul.mubr.f32.gmra.mrb[0].mxu0 %v125
  %v404 = vpop.f32.mrb[0].mxu0
  %v405 = vadd.f32 %v94, %v404
  %v406 = vpop.f32.mrb[0].mxu0
  %407 = vmatprep.mubr.f32.mxu0 0.0
  %408 = vmatmul.mubr.f32.gmra.mrb[0].mxu0 %v128
  %v409 = vpop.f32.mrb[0].mxu0
  %v410 = vadd.f32 %v94, %v409
  %v411 = vpop.f32.mrb[0].mxu0
  %412 = vmatprep.mubr.f32.mxu0 0.0
  %413 = vmatmul.mubr.f32.gmra.mrb[0].mxu0 %v131
  %v414 = vpop.f32.mrb[0].mxu0
  %v415 = vadd.f32 %v94, %v414
  %v416 = vpop.f32.mrb[0].mxu0
  %417 = vmatprep.mubr.f32.mxu0 0.0
  %418 = vmatmul.mubr.f32.gmra.mrb[0].mxu0 %v134
  %v419 = vpop.f32.mrb[0].mxu0
  %v420 = vadd.f32 %v94, %v419
  %v421 = vpop.f32.mrb[0].mxu0
  %422 = vmatprep.mubr.f32.mxu0 0.0
  %423 = vmatmul.mubr.f32.gmra.mrb[0].mxu0 %v137
  %v424 = vpop.f32.mrb[0].mxu0
  %v425 = vadd.f32 %v94, %v424
  %v426 = vpop.f32.mrb[0].mxu0
  %427 = vmatprep.mubr.f32.mxu0 0.0
  %428 = vmatmul.mubr.f32.gmra.mrb[0].mxu0 %v140
  %v429 = vpop.f32.mrb[0].mxu0
  %v430 = vadd.f32 %v94, %v429
  %v431 = vpop.f32.mrb[0].mxu0
  %432 = vmatprep.mubr.f32.mxu0 0.0
  %433 = vmatmul.mubr.f32.gmra.mrb[0].mxu0 %v143
  %v434 = vpop.f32.mrb[0].mxu0
  %v435 = vadd.f32 %v94, %v434
  %v436 = vpop.f32.mrb[0].mxu0
  %437 = vmatprep.mubr.f32.mxu0 0.0
  %438 = vmatmul.mubr.f32.gmra.mrb[0].mxu0 %v146
  %v439 = vpop.f32.mrb[0].mxu0
  %v440 = vadd.f32 %v94, %v439
  %v441 = vpop.f32.mrb[0].mxu0
  %442 = vmatprep.mubr.f32.mxu0 0.0
  %443 = vmatmul.mubr.f32.gmra.mrb[0].mxu0 %v149
  %v444 = vpop.f32.mrb[0].mxu0
  %v445 = vadd.f32 %v94, %v444
  %v446 = vpop.f32.mrb[0].mxu0
  %447 = vmatprep.mubr.f32.mxu0 0.0
  %448 = vmatmul.mubr.f32.gmra.mrb[0].mxu0 %v152
  %v449 = vpop.f32.mrb[0].mxu0
  %v450 = vadd.f32 %v94, %v449
  %v451 = vpop.f32.mrb[0].mxu0
  %452 = vmatprep.mubr.f32.mxu0 0.0
  %453 = vmatmul.mubr.f32.gmra.mrb[0].mxu0 %v155
  %v454 = vpop.f32.mrb[0].mxu0
  %v455 = vadd.f32 %v94, %v454
  %v456 = vpop.f32.mrb[0].mxu0
  %457 = vmatprep.mubr.f32.mxu0 0.0
  %458 = vmatmul.mubr.f32.gmra.mrb[0].mxu0 %v158
  %v459 = vpop.f32.mrb[0].mxu0
  %v460 = vadd.f32 %v94, %v459
  %v461 = vpop.f32.mrb[0].mxu0
  %462 = vmatprep.mubr.f32.mxu0 0.0
  %463 = vmatmul.mubr.f32.gmra.mrb[0].mxu0 %v161
  %v464 = vpop.f32.mrb[0].mxu0
  %v465 = vadd.f32 %v94, %v464
  %v466 = vpop.f32.mrb[0].mxu0
  %467 = vmatprep.mubr.f32.mxu0 0.0
  %468 = vmatmul.mubr.f32.gmra.mrb[0].mxu0 %v164
  %v469 = vpop.f32.mrb[0].mxu0
  %v470 = vadd.f32 %v94, %v469
  %v471 = vpop.f32.mrb[0].mxu0
  %472 = vmatprep.mubr.f32.mxu0 0.0
  %473 = vmatmul.mubr.f32.gmra.mrb[0].mxu0 %v167
  %v474 = vpop.f32.mrb[0].mxu0
  %v475 = vadd.f32 %v94, %v474
  %v476 = vpop.f32.mrb[0].mxu0
  %477 = vmatprep.mubr.f32.mxu0 0.0
  %478 = vmatmul.mubr.f32.gmra.mrb[0].mxu0 %v170
  %v479 = vpop.f32.mrb[0].mxu0
  %v480 = vadd.f32 %v94, %v479
  %v481 = vpop.f32.mrb[0].mxu0
  %482 = vmatprep.mubr.f32.mxu0 0.0
  %483 = vmatmul.mubr.f32.gmra.mrb[0].mxu0 %v173
  %v484 = vpop.f32.mrb[0].mxu0
  %v485 = vadd.f32 %v94, %v484
  %v486 = vpop.f32.mrb[0].mxu0
  %487 = vmatprep.mubr.f32.mxu0 0.0
  %488 = vmatmul.mubr.f32.gmra.mrb[0].mxu0 %v176
  %v489 = vpop.f32.mrb[0].mxu0
  %v490 = vadd.f32 %v94, %v489
  %v491 = vpop.f32.mrb[0].mxu0
  %492 = vmatprep.mubr.f32.mxu0 0.0
  %493 = vmatmul.mubr.f32.gmra.mrb[0].mxu0 %v179
  %v494 = vpop.f32.mrb[0].mxu0
  %v495 = vadd.f32 %v94, %v494
  %v496 = vpop.f32.mrb[0].mxu0
  %497 = vmatprep.mubr.f32.mxu0 0.0
  %498 = vmatmul.mubr.f32.gmra.mrb[0].mxu0 %v182
  %v499 = vpop.f32.mrb[0].mxu0
  %v500 = vadd.f32 %v94, %v499
  %v501 = vpop.f32.mrb[0].mxu0
  %502 = vmatprep.mubr.f32.mxu0 0.0
  %503 = vmatmul.mubr.f32.gmra.mrb[0].mxu0 %v185
  %v504 = vpop.f32.mrb[0].mxu0
  %v505 = vadd.f32 %v94, %v504
  %v506 = vpop.f32.mrb[0].mxu0
  %507 = vmatprep.mubr.f32.mxu0 0.0
  %508 = vmatmul.mubr.f32.gmra.mrb[0].mxu0 %v188
  %v509 = vpop.f32.mrb[0].mxu0
  %v510 = vadd.f32 %v94, %v509
  %v511 = vpop.f32.mrb[0].mxu0
  %512 = vmatprep.mubr.f32.mxu0 0.0
  %513 = vmatmul.mubr.f32.gmra.mrb[0].mxu0 %v191
  %v514 = vpop.f32.mrb[0].mxu0
  %v515 = vadd.f32 %v94, %v514
  %v516 = vpop.f32.mrb[0].mxu0
  %517 = vmatprep.mubr.f32.mxu0 0.0
  %518 = vmatmul.mubr.f32.gmra.mrb[0].mxu0 %v194
  %v519 = vpop.f32.mrb[0].mxu0
  %v520 = vadd.f32 %v94, %v519
  %v521 = vpop.f32.mrb[0].mxu0
  %522 = vmatprep.mubr.f32.mxu0 0.0
  %523 = vmatmul.mubr.f32.gmra.mrb[0].mxu0 %v197
  %v524 = vpop.f32.mrb[0].mxu0
  %v525 = vadd.f32 %v94, %v524
  %v526 = vpop.f32.mrb[0].mxu0
  %527 = vmatprep.mubr.f32.mxu0 0.0
  %528 = vmatmul.mubr.f32.gmra.mrb[0].mxu0 %v200
  %v529 = vpop.f32.mrb[0].mxu0
  %v530 = vadd.f32 %v94, %v529
  %v531 = vpop.f32.mrb[0].mxu0
  %532 = vmatprep.mubr.f32.mxu0 0.0
  %533 = vmatmul.mubr.f32.gmra.mrb[0].mxu0 %v203
  %v534 = vpop.f32.mrb[0].mxu0
  %v535 = vadd.f32 %v94, %v534
  %v536 = vpop.f32.mrb[0].mxu0
  %537 = vmatprep.mubr.f32.mxu0 0.0
  %538 = vmatmul.mubr.f32.gmra.mrb[0].mxu0 %v206
  %v539 = vpop.f32.mrb[0].mxu0
  %v540 = vadd.f32 %v94, %v539
  %v541 = vpop.f32.mrb[0].mxu0
  %542 = vmatprep.mubr.f32.mxu0 0.0
  %543 = vmatmul.mubr.f32.gmra.mrb[0].mxu0 %v209
  %v544 = vpop.f32.mrb[0].mxu0
  %v545 = vadd.f32 %v94, %v544
  %v546 = vpop.f32.mrb[0].mxu0
  %547 = vmatprep.mubr.f32.mxu0 0.0
  %548 = vmatmul.mubr.f32.gmra.mrb[0].mxu0 %v212
  %v549 = vpop.f32.mrb[0].mxu0
  %v550 = vadd.f32 %v94, %v549
  %v551 = vpop.f32.mrb[0].mxu0
  %552 = vmatprep.mubr.f32.mxu0 0.0
  %553 = vmatmul.mubr.f32.gmra.mrb[0].mxu0 %v215
  %v554 = vpop.f32.mrb[0].mxu0
  %v555 = vadd.f32 %v94, %v554
  %v556 = vpop.f32.mrb[0].mxu0
  %557 = vmatprep.mubr.f32.mxu0 0.0
  %558 = vmatmul.mubr.f32.gmra.mrb[0].mxu0 %v218
  %v559 = vpop.f32.mrb[0].mxu0
  %v560 = vadd.f32 %v94, %v559
  %v561 = vpop.f32.mrb[0].mxu0
  %562 = vmatprep.mubr.f32.mxu0 0.0
  %563 = vmatmul.mubr.f32.gmra.mrb[0].mxu0 %v221
  %v564 = vpop.f32.mrb[0].mxu0
  %v565 = vadd.f32 %v94, %v564
  %v566 = vpop.f32.mrb[0].mxu0
  %567 = vmatprep.mubr.f32.mxu0 0.0
  %568 = vmatmul.mubr.f32.gmra.mrb[0].mxu0 %v224
  %v569 = vpop.f32.mrb[0].mxu0
  %v570 = vadd.f32 %v94, %v569
  %v571 = vpop.f32.mrb[0].mxu0
  %572 = vmatprep.mubr.f32.mxu0 0.0
  %573 = vmatmul.mubr.f32.gmra.mrb[0].mxu0 %v227
  %v574 = vpop.f32.mrb[0].mxu0
  %v575 = vadd.f32 %v94, %v574
  %v576 = vpop.f32.mrb[0].mxu0
  %577 = vmatprep.mubr.f32.mxu0 0.0
  %578 = vmatmul.mubr.f32.gmra.mrb[0].mxu0 %v230
  %v579 = vpop.f32.mrb[0].mxu0
  %v580 = vadd.f32 %v94, %v579
  %v581 = vpop.f32.mrb[0].mxu0
  %582 = vmatprep.mubr.f32.mxu0 0.0
  %583 = vmatmul.mubr.f32.gmra.mrb[0].mxu0 %v233
  %v584 = vpop.f32.mrb[0].mxu0
  %v585 = vadd.f32 %v94, %v584
  %v586 = vpop.f32.mrb[0].mxu0
  %587 = vmatprep.mubr.f32.mxu0 0.0
  %588 = vmatmul.mubr.f32.gmra.mrb[0].mxu0 %v236
  %v589 = vpop.f32.mrb[0].mxu0
  %v590 = vadd.f32 %v94, %v589
  %v591 = vpop.f32.mrb[0].mxu0
  %592 = vmatprep.mubr.f32.mxu0 0.0
  %593 = vmatmul.mubr.f32.gmra.mrb[0].mxu0 %v239
  %v594 = vpop.f32.mrb[0].mxu0
  %v595 = vadd.f32 %v94, %v594
  %v596 = vpop.f32.mrb[0].mxu0
  %597 = vmatprep.mubr.f32.mxu0 0.0
  %598 = vmatmul.mubr.f32.gmra.mrb[0].mxu0 %v242
  %v599 = vpop.f32.mrb[0].mxu0
  %v600 = vadd.f32 %v94, %v599
  %v601 = vpop.f32.mrb[0].mxu0
  %602 = vmatprep.mubr.f32.mxu0 0.0
  %603 = vmatmul.mubr.f32.gmra.mrb[0].mxu0 %v245
  %v604 = vpop.f32.mrb[0].mxu0
  %v605 = vadd.f32 %v94, %v604
  %v606 = vpop.f32.mrb[0].mxu0
  %607 = vmatprep.mubr.f32.mxu0 0.0
  %608 = vmatmul.mubr.f32.gmra.mrb[0].mxu0 %v248
  %v609 = vpop.f32.mrb[0].mxu0
  %v610 = vadd.f32 %v94, %v609
  %v611 = vpop.f32.mrb[0].mxu0
  %612 = vmatprep.mubr.f32.mxu0 0.0
  %613 = vmatmul.mubr.f32.gmra.mrb[0].mxu0 %v251
  %v614 = vpop.f32.mrb[0].mxu0
  %v615 = vadd.f32 %v94, %v614
  %v616 = vpop.f32.mrb[0].mxu0
  %617 = vmatprep.mubr.f32.mxu0 0.0
  %618 = vmatmul.mubr.f32.gmra.mrb[0].mxu0 %v254
  %v619 = vpop.f32.mrb[0].mxu0
  %v620 = vadd.f32 %v94, %v619
  %v621 = vpop.f32.mrb[0].mxu0
  %622 = vmatprep.mubr.f32.mxu0 0.0
  %623 = vmatmul.mubr.f32.gmra.mrb[0].mxu0 %v257
  %v624 = vpop.f32.mrb[0].mxu0
  %v625 = vadd.f32 %v94, %v624
  %v626 = vpop.f32.mrb[0].mxu0
  %627 = vmatprep.mubr.f32.mxu0 0.0
  %628 = vmatmul.mubr.f32.gmra.mrb[0].mxu0 %v260
  %v629 = vpop.f32.mrb[0].mxu0
  %v630 = vadd.f32 %v94, %v629
  %v631 = vpop.f32.mrb[0].mxu0
  %632 = vmatprep.mubr.f32.mxu0 0.0
  %633 = vmatmul.mubr.f32.gmra.mrb[0].mxu0 %v263
  %v634 = vpop.f32.mrb[0].mxu0
  %v635 = vadd.f32 %v94, %v634
  %v636 = vpop.f32.mrb[0].mxu0
  %637 = vmatprep.mubr.f32.mxu0 0.0
  %638 = vmatmul.mubr.f32.gmra.mrb[0].mxu0 %v266
  %v639 = vpop.f32.mrb[0].mxu0
  %v640 = vadd.f32 %v94, %v639
  %v641 = vpop.f32.mrb[0].mxu0
  %642 = vmatprep.mubr.f32.mxu0 0.0
  %643 = vmatmul.mubr.f32.gmra.mrb[0].mxu0 %v269
  %v644 = vpop.f32.mrb[0].mxu0
  %v645 = vadd.f32 %v94, %v644
  %v646 = vpop.f32.mrb[0].mxu0
  %647 = vmatprep.mubr.f32.mxu0 0.0
  %648 = vmatmul.mubr.f32.gmra.mrb[0].mxu0 %v272
  %v649 = vpop.f32.mrb[0].mxu0
  %v650 = vadd.f32 %v94, %v649
  %v651 = vpop.f32.mrb[0].mxu0
  %652 = vmatprep.mubr.f32.mxu0 0.0
  %653 = vmatmul.mubr.f32.gmra.mrb[0].mxu0 %v275
  %v654 = vpop.f32.mrb[0].mxu0
  %v655 = vadd.f32 %v94, %v654
  %v656 = vpop.f32.mrb[0].mxu0
  %657 = vmatprep.mubr.f32.mxu0 0.0
  %658 = vmatmul.mubr.f32.gmra.mrb[0].mxu0 %v278
  %v659 = vpop.f32.mrb[0].mxu0
  %v660 = vadd.f32 %v94, %v659
  %v661 = vpop.f32.mrb[0].mxu0
  %662 = vmatprep.mubr.f32.mxu0 0.0
  %663 = vmatmul.mubr.f32.gmra.mrb[0].mxu0 %v281
  %v664 = vpop.f32.mrb[0].mxu0
  %v665 = vadd.f32 %v94, %v664
  %v666 = vpop.f32.mrb[0].mxu0
  %667 = vmatprep.mubr.f32.mxu0 0.0
  %668 = vmatmul.mubr.f32.gmra.mrb[0].mxu0 %v284
  %v669 = vpop.f32.mrb[0].mxu0
  %v670 = vadd.f32 %v94, %v669
  %v671 = vpop.f32.mrb[0].mxu0
  %672 = vmatprep.mubr.f32.mxu0 0.0
  %673 = vmatmul.mubr.f32.gmra.mrb[0].mxu0 %v287
  %v674 = vpop.f32.mrb[0].mxu0
  %v675 = vadd.f32 %v94, %v674
  %v676 = vpop.f32.mrb[0].mxu0
  %677 = vdwg.mxu0
  %v678 = vmax.f32 %v360, 0.0
  %v679 = vmax.f32 %v365, 0.0
  %v680 = vmax.f32 %v370, 0.0
  %v681 = vmax.f32 %v375, 0.0
  %v682 = vmax.f32 %v380, 0.0
  %v683 = vmax.f32 %v385, 0.0
  %v684 = vmax.f32 %v390, 0.0
  %v685 = vmax.f32 %v395, 0.0
  %v686 = vmax.f32 %v400, 0.0
  %v687 = vmax.f32 %v405, 0.0
  %v688 = vmax.f32 %v410, 0.0
  %v689 = vmax.f32 %v415, 0.0
  %v690 = vmax.f32 %v420, 0.0
  %v691 = vmax.f32 %v425, 0.0
  %v692 = vmax.f32 %v430, 0.0
  %v693 = vmax.f32 %v435, 0.0
  %v694 = vmax.f32 %v440, 0.0
  %v695 = vmax.f32 %v445, 0.0
  %v696 = vmax.f32 %v450, 0.0
  %v697 = vmax.f32 %v455, 0.0
  %v698 = vmax.f32 %v460, 0.0
  %v699 = vmax.f32 %v465, 0.0
  %v700 = vmax.f32 %v470, 0.0
  %v701 = vmax.f32 %v475, 0.0
  %v702 = vmax.f32 %v480, 0.0
  %v703 = vmax.f32 %v485, 0.0
  %v704 = vmax.f32 %v490, 0.0
  %v705 = vmax.f32 %v495, 0.0
  %v706 = vmax.f32 %v500, 0.0
  %v707 = vmax.f32 %v505, 0.0
  %v708 = vmax.f32 %v510, 0.0
  %v709 = vmax.f32 %v515, 0.0
  %v710 = vmax.f32 %v520, 0.0
  %v711 = vmax.f32 %v525, 0.0
  %v712 = vmax.f32 %v530, 0.0
  %v713 = vmax.f32 %v535, 0.0
  %v714 = vmax.f32 %v540, 0.0
  %v715 = vmax.f32 %v545, 0.0
  %v716 = vmax.f32 %v550, 0.0
  %v717 = vmax.f32 %v555, 0.0
  %v718 = vmax.f32 %v560, 0.0
  %v719 = vmax.f32 %v565, 0.0
  %v720 = vmax.f32 %v570, 0.0
  %v721 = vmax.f32 %v575, 0.0
  %v722 = vmax.f32 %v580, 0.0
  %v723 = vmax.f32 %v585, 0.0
  %v724 = vmax.f32 %v590, 0.0
  %v725 = vmax.f32 %v595, 0.0
  %v726 = vmax.f32 %v600, 0.0
  %v727 = vmax.f32 %v605, 0.0
  %v728 = vmax.f32 %v610, 0.0
  %v729 = vmax.f32 %v615, 0.0
  %v730 = vmax.f32 %v620, 0.0
  %v731 = vmax.f32 %v625, 0.0
  %v732 = vmax.f32 %v630, 0.0
  %v733 = vmax.f32 %v635, 0.0
  %v734 = vmax.f32 %v640, 0.0
  %v735 = vmax.f32 %v645, 0.0
  %v736 = vmax.f32 %v650, 0.0
  %v737 = vmax.f32 %v655, 0.0
  %v738 = vmax.f32 %v660, 0.0
  %v739 = vmax.f32 %v665, 0.0
  %v740 = vmax.f32 %v670, 0.0
  %v741 = vmax.f32 %v675, 0.0
  %v742 = vlaneseq
  %v743 = vshrl.u32 %v742, 7
  %v744 = vlaneseq
  %v745 = vand.u32 %v744, 127
  %v746 = vadd.s32 %v745, 128
  %v747 = vadd.s32 %v745, 256
  %v748 = vadd.s32 %v745, 384
  %v749 = vmul.u32 %v743, 256
  %vm750 = vcmp.ge.s32.totalorder %v745, %v749
  %vm751 = vcmp.ge.s32.totalorder %v746, %v749
  %vm752 = vcmp.ge.s32.totalorder %v747, %v749
  %vm753 = vcmp.ge.s32.totalorder %v748, %v749
  %v754 = vadd.s32 %v743, 1
  %v755 = vmul.u32 %v754, 256
  %vm756 = vcmp.lt.s32.totalorder %v745, %v755
  %vm757 = vcmp.lt.s32.totalorder %v746, %v755
  %vm758 = vcmp.lt.s32.totalorder %v747, %v755
  %vm759 = vcmp.lt.s32.totalorder %v748, %v755
  %vm760 = vmand %vm750, %vm756
  %vm761 = vmand %vm751, %vm757
  %vm762 = vmand %vm752, %vm758
  %vm763 = vmand %vm753, %vm759
  %v764 = vsel %vm760, 0.00390625, 0.0
  %v765 = vsel %vm761, 0.00390625, 0.0
  %v766 = vsel %vm762, 0.00390625, 0.0
  %v767 = vsel %vm763, 0.00390625, 0.0
  %768 = vmatprep.subr.mxu0 0.0
  %769 = vmatpush1.msra.mxu0 %v678
  %770 = vmatprep.subr.mxu0 0.0
  %771 = vmatpush1.msra.mxu0 %v679
  %772 = vmatprep.subr.mxu0 0.0
  %773 = vmatpush1.msra.mxu0 %v680
  %774 = vmatprep.subr.mxu0 0.0
  %775 = vmatpush1.msra.mxu0 %v681
  %776 = vmatprep.subr.mxu0 0.0
  %777 = vmatpush1.msra.mxu0 %v682
  %778 = vmatprep.subr.mxu0 0.0
  %779 = vmatpush1.msra.mxu0 %v683
  %780 = vmatprep.subr.mxu0 0.0
  %781 = vmatpush1.msra.mxu0 %v684
  %782 = vmatprep.subr.mxu0 0.0
  %783 = vmatpush1.msra.mxu0 %v685
  %784 = vmatprep.subr.mxu0 0.0
  %785 = vmatpush1.msra.mxu0 %v686
  %786 = vmatprep.subr.mxu0 0.0
  %787 = vmatpush1.msra.mxu0 %v687
  %788 = vmatprep.subr.mxu0 0.0
  %789 = vmatpush1.msra.mxu0 %v688
  %790 = vmatprep.subr.mxu0 0.0
  %791 = vmatpush1.msra.mxu0 %v689
  %792 = vmatprep.subr.mxu0 0.0
  %793 = vmatpush1.msra.mxu0 %v690
  %794 = vmatprep.subr.mxu0 0.0
  %795 = vmatpush1.msra.mxu0 %v691
  %796 = vmatprep.subr.mxu0 0.0
  %797 = vmatpush1.msra.mxu0 %v692
  %798 = vmatprep.subr.mxu0 0.0
  %799 = vmatpush1.msra.mxu0 %v693
  %800 = vmatprep.subr.mxu0 0.0
  %801 = vmatpush1.msra.mxu0 %v694
  %802 = vmatprep.subr.mxu0 0.0
  %803 = vmatpush1.msra.mxu0 %v695
  %804 = vmatprep.subr.mxu0 0.0
  %805 = vmatpush1.msra.mxu0 %v696
  %806 = vmatprep.subr.mxu0 0.0
  %807 = vmatpush1.msra.mxu0 %v697
  %808 = vmatprep.subr.mxu0 0.0
  %809 = vmatpush1.msra.mxu0 %v698
  %810 = vmatprep.subr.mxu0 0.0
  %811 = vmatpush1.msra.mxu0 %v699
  %812 = vmatprep.subr.mxu0 0.0
  %813 = vmatpush1.msra.mxu0 %v700
  %814 = vmatprep.subr.mxu0 0.0
  %815 = vmatpush1.msra.mxu0 %v701
  %816 = vmatprep.subr.mxu0 0.0
  %817 = vmatpush1.msra.mxu0 %v702
  %818 = vmatprep.subr.mxu0 0.0
  %819 = vmatpush1.msra.mxu0 %v703
  %820 = vmatprep.subr.mxu0 0.0
  %821 = vmatpush1.msra.mxu0 %v704
  %822 = vmatprep.subr.mxu0 0.0
  %823 = vmatpush1.msra.mxu0 %v705
  %824 = vmatprep.subr.mxu0 0.0
  %825 = vmatpush1.msra.mxu0 %v706
  %826 = vmatprep.subr.mxu0 0.0
  %827 = vmatpush1.msra.mxu0 %v707
  %828 = vmatprep.subr.mxu0 0.0
  %829 = vmatpush1.msra.mxu0 %v708
  %830 = vmatprep.subr.mxu0 0.0
  %831 = vmatpush1.msra.mxu0 %v709
  %832 = vmatprep.mubr.f32.mxu0 %v765
  %833 = vmatmul.mubr.f32.gmra.mrb[0].mxu0 %v764
  %v834 = vpop.f32.mrb[0].mxu0
  %v835 = vadd.f32 0.0, %v834
  %v836 = vpop.f32.mrb[0].mxu0
  %837 = vdwg.mxu0
  %838 = vmatprep.subr.mxu0 0.0
  %839 = vmatpush1.msra.mxu0 %v710
  %840 = vmatprep.subr.mxu0 0.0
  %841 = vmatpush1.msra.mxu0 %v711
  %842 = vmatprep.subr.mxu0 0.0
  %843 = vmatpush1.msra.mxu0 %v712
  %844 = vmatprep.subr.mxu0 0.0
  %845 = vmatpush1.msra.mxu0 %v713
  %846 = vmatprep.subr.mxu0 0.0
  %847 = vmatpush1.msra.mxu0 %v714
  %848 = vmatprep.subr.mxu0 0.0
  %849 = vmatpush1.msra.mxu0 %v715
  %850 = vmatprep.subr.mxu0 0.0
  %851 = vmatpush1.msra.mxu0 %v716
  %852 = vmatprep.subr.mxu0 0.0
  %853 = vmatpush1.msra.mxu0 %v717
  %854 = vmatprep.subr.mxu0 0.0
  %855 = vmatpush1.msra.mxu0 %v718
  %856 = vmatprep.subr.mxu0 0.0
  %857 = vmatpush1.msra.mxu0 %v719
  %858 = vmatprep.subr.mxu0 0.0
  %859 = vmatpush1.msra.mxu0 %v720
  %860 = vmatprep.subr.mxu0 0.0
  %861 = vmatpush1.msra.mxu0 %v721
  %862 = vmatprep.subr.mxu0 0.0
  %863 = vmatpush1.msra.mxu0 %v722
  %864 = vmatprep.subr.mxu0 0.0
  %865 = vmatpush1.msra.mxu0 %v723
  %866 = vmatprep.subr.mxu0 0.0
  %867 = vmatpush1.msra.mxu0 %v724
  %868 = vmatprep.subr.mxu0 0.0
  %869 = vmatpush1.msra.mxu0 %v725
  %870 = vmatprep.subr.mxu0 0.0
  %871 = vmatpush1.msra.mxu0 %v726
  %872 = vmatprep.subr.mxu0 0.0
  %873 = vmatpush1.msra.mxu0 %v727
  %874 = vmatprep.subr.mxu0 0.0
  %875 = vmatpush1.msra.mxu0 %v728
  %876 = vmatprep.subr.mxu0 0.0
  %877 = vmatpush1.msra.mxu0 %v729
  %878 = vmatprep.subr.mxu0 0.0
  %879 = vmatpush1.msra.mxu0 %v730
  %880 = vmatprep.subr.mxu0 0.0
  %881 = vmatpush1.msra.mxu0 %v731
  %882 = vmatprep.subr.mxu0 0.0
  %883 = vmatpush1.msra.mxu0 %v732
  %884 = vmatprep.subr.mxu0 0.0
  %885 = vmatpush1.msra.mxu0 %v733
  %886 = vmatprep.subr.mxu0 0.0
  %887 = vmatpush1.msra.mxu0 %v734
  %888 = vmatprep.subr.mxu0 0.0
  %889 = vmatpush1.msra.mxu0 %v735
  %890 = vmatprep.subr.mxu0 0.0
  %891 = vmatpush1.msra.mxu0 %v736
  %892 = vmatprep.subr.mxu0 0.0
  %893 = vmatpush1.msra.mxu0 %v737
  %894 = vmatprep.subr.mxu0 0.0
  %895 = vmatpush1.msra.mxu0 %v738
  %896 = vmatprep.subr.mxu0 0.0
  %897 = vmatpush1.msra.mxu0 %v739
  %898 = vmatprep.subr.mxu0 0.0
  %899 = vmatpush1.msra.mxu0 %v740
  %900 = vmatprep.subr.mxu0 0.0
  %901 = vmatpush1.msra.mxu0 %v741
  %902 = vmatprep.mubr.f32.mxu0 %v767
  %903 = vmatmul.mubr.f32.gmra.mrb[0].mxu0 %v766
  %v904 = vpop.f32.mrb[0].mxu0
  %v905 = vadd.f32 %v835, %v904
  %v906 = vpop.f32.mrb[0].mxu0
  %907 = vdwg.mxu0
  %v908 = vld [vmem:[%s3] sm:$0xff]
  %v909 = vld [vmem:[%s3 + $0x8] sm:$0xff]
  %v910 = vld [vmem:[%s3 + $0x10] sm:$0xff]
  %v911 = vld [vmem:[%s3 + $0x18] sm:$0xff]
  %v912 = vld [vmem:[%s4] sm:$0x1]
  %v914 = vlaneseq
  %v915 = vshrl.u32 %v914, 7
  %v916 = vsub.s32 0, %v915
  %v917 = vrot.slane %v912, %v916
  %vm919 = vcmask 261120
  %v921 = vsel %vm919, %v905, 0
  %923 = vmatprep.subr.mxu0 0.0
  %924 = vmatpush1.msra.mxu0 %v908
  %925 = vmatprep.subr.mxu0 0.0
  %926 = vmatpush1.msra.mxu0 %v909
  %927 = vmatprep.subr.mxu0 0.0
  %928 = vmatpush1.msra.mxu0 %v910
  %929 = vmatprep.subr.mxu0 0.0
  %930 = vmatpush1.msra.mxu0 %v911
  %931 = vmatprep.subr.mxu0 0.0
  %932 = vmatpush1.msra.mxu0 0.0
  %933 = vmatprep.subr.mxu0 0.0
  %934 = vmatpush1.msra.mxu0 0.0
  %935 = vmatprep.subr.mxu0 0.0
  %936 = vmatpush1.msra.mxu0 0.0
  %937 = vmatprep.subr.mxu0 0.0
  %938 = vmatpush1.msra.mxu0 0.0
  %939 = vmatprep.subr.mxu0 0.0
  %940 = vmatpush1.msra.mxu0 0.0
  %941 = vmatprep.subr.mxu0 0.0
  %942 = vmatpush1.msra.mxu0 0.0
  %943 = vmatprep.subr.mxu0 0.0
  %944 = vmatpush1.msra.mxu0 0.0
  %945 = vmatprep.subr.mxu0 0.0
  %946 = vmatpush1.msra.mxu0 0.0
  %947 = vmatprep.subr.mxu0 0.0
  %948 = vmatpush1.msra.mxu0 0.0
  %949 = vmatprep.subr.mxu0 0.0
  %950 = vmatpush1.msra.mxu0 0.0
  %951 = vmatprep.subr.mxu0 0.0
  %952 = vmatpush1.msra.mxu0 0.0
  %953 = vmatprep.subr.mxu0 0.0
  %954 = vmatpush1.msra.mxu0 0.0
  %955 = vmatprep.subr.mxu0 0.0
  %956 = vmatpush1.msra.mxu0 0.0
  %957 = vmatprep.subr.mxu0 0.0
  %958 = vmatpush1.msra.mxu0 0.0
  %959 = vmatprep.subr.mxu0 0.0
  %960 = vmatpush1.msra.mxu0 0.0
  %961 = vmatprep.subr.mxu0 0.0
  %962 = vmatpush1.msra.mxu0 0.0
  %963 = vmatprep.subr.mxu0 0.0
  %964 = vmatpush1.msra.mxu0 0.0
  %965 = vmatprep.subr.mxu0 0.0
  %966 = vmatpush1.msra.mxu0 0.0
  %967 = vmatprep.subr.mxu0 0.0
  %968 = vmatpush1.msra.mxu0 0.0
  %969 = vmatprep.subr.mxu0 0.0
  %970 = vmatpush1.msra.mxu0 0.0
  %971 = vmatprep.subr.mxu0 0.0
  %972 = vmatpush1.msra.mxu0 0.0
  %973 = vmatprep.subr.mxu0 0.0
  %974 = vmatpush1.msra.mxu0 0.0
  %975 = vmatprep.subr.mxu0 0.0
  %976 = vmatpush1.msra.mxu0 0.0
  %977 = vmatprep.subr.mxu0 0.0
  %978 = vmatpush1.msra.mxu0 0.0
  %979 = vmatprep.subr.mxu0 0.0
  %980 = vmatpush1.msra.mxu0 0.0
  %981 = vmatprep.subr.mxu0 0.0
  %982 = vmatpush1.msra.mxu0 0.0
  %983 = vmatprep.subr.mxu0 0.0
  %984 = vmatpush1.msra.mxu0 0.0
  %985 = vmatprep.subr.mxu0 0.0
  %986 = vmatpush1.msra.mxu0 0.0
  %987 = vmatprep.mubr.f32.mxu0 0.0
  %988 = vmatmul.mubr.f32.gmra.mrb[0].mxu0 %v921
  %v989 = vpop.f32.mrb[0].mxu0
  %v990 = vadd.f32 %v917, %v989
  %v991 = vpop.f32.mrb[0].mxu0
  %992 = vdwg.mxu0
  %993 = vst [vmem:[%s5] sm:$0xff] %v990
  // Predicated region
  $region22: #{multilabel_forward.1} parent=0 // pred_check
    _
  $region23: #{multilabel_forward.1} parent=0 // pred_check_branch
    %995 = sbr.rel (0) target = $region25
  $region24: #{multilabel_forward.1} parent=0 // pred_region
    _
  $region25: #{multilabel_forward.1} parent=0 // pred_fallthru
    _
  // Predicated region
  $region26: #{multilabel_forward.1} parent=0 // pred_check
    _
  $region27: #{multilabel_forward.1} parent=0 // pred_check_branch
    %997 = sbr.rel (0) target = $region29
  $region28: #{multilabel_forward.1} parent=0 // pred_region
    _
  $region29: #{multilabel_forward.1} parent=0 // pred_fallthru
    _

</llo_original>
